<compile_context>
chip_gen: v6e
topology: v6e:2x2x1
jax: 0.10.0
libtpu: 0.0.40
codegen_flags: <defaults>
</compile_context>

<pallas_src>
import numpy as np
import jax
import jax.numpy as jnp
from jax.experimental import pallas as pl
from jax.experimental.pallas import tpu as pltpu


# ---------------------------------------------------------------------------
# kernel
# ---------------------------------------------------------------------------
def _make_edge_kernel(dilate, thresh):
    pad = dilate // 2
    # mean > t  <=>  channel-sum > 3t  (folds the /3; may differ from the
    # reference by ~1 ULP exactly at the threshold boundary).
    thresh3 = np.float32(3.0) * np.float32(thresh)

    def _shift(a, delta, axis):
        """out[i] = a[(i + delta) % n] along `axis` (pure XLU rotation)."""
        axis = axis % a.ndim
        n = a.shape[axis]
        return pltpu.roll(a, (-delta) % n, axis=axis)

    def kernel(x_ref, o_ref):
        Bt, C, H, W = x_ref.shape
        f32 = jnp.float32

        # Border masks, hoisted once; (H, W) broadcasts against (Bt, H, W).
        row = jax.lax.broadcasted_iota(jnp.int32, (H, W), 0)
        col = jax.lax.broadcasted_iota(jnp.int32, (H, W), 1)
        first_row, last_row = row == 0, row == H - 1
        first_col, last_col = col == 0, col == W - 1

        def reflect_pair(a, axis, first_mask, last_mask):
            """(a[i+1], a[i-1]) along `axis` with 1-px reflection at borders."""
            fwd = _shift(a, +1, axis)                    # a[i+1] (wraps at n-1)
            bwd = _shift(a, -1, axis)                    # a[i-1] (wraps at 0)
            plus = jnp.where(last_mask, bwd, fwd)        # reflect n-1 -> n-2
            minus = jnp.where(first_mask, fwd, bwd)      # reflect 0   -> 1
            return plus, minus

        # ---- separable Sobel, per channel (keeps live temps ~1 plane deep) --
        #   kh = [1,2,1]_H (smooth)  x  [-1,0,1]_W (diff)
        #   kv = [-1,0,1]_H (diff)   x  [ 1,2,1]_W (smooth)
        esum = jnp.zeros((Bt, H, W), f32)
        for c in range(C):
            xc = x_ref[:, c, :, :].astype(f32)           # cast at load boundary
            xl, xr = reflect_pair(xc, -1, first_col, last_col)   # x[.,j+1], x[.,j-1]
            d_w = xl - xr                                # diff along W
            s_w = xl + 2.0 * xc + xr                     # smooth along W
            d_up, d_dn = reflect_pair(d_w, -2, first_row, last_row)
            s_up, s_dn = reflect_pair(s_w, -2, first_row, last_row)
            eh = d_up + 2.0 * d_w + d_dn                 # smooth along H
            ev = s_up - s_dn                             # diff along H
            esum = esum + jnp.maximum(jnp.abs(eh), jnp.abs(ev))

        edge = (esum > thresh3).astype(f32)              # (Bt, H, W) in {0, 1}

        # ---- separable stride-1 max-pool (dilation) -------------------------
        # Zero-filled border shifts == PyTorch's -inf pool padding because the
        # pooled values are post-threshold (>= 0).
        m = edge
        for s in range(1, pad + 1):
            m = jnp.maximum(m, jnp.where(row < H - s, _shift(edge, +s, -2), 0.0))
            m = jnp.maximum(m, jnp.where(row >= s, _shift(edge, -s, -2), 0.0))
        out = m
        for s in range(1, pad + 1):
            out = jnp.maximum(out, jnp.where(col < W - s, _shift(m, +s, -1), 0.0))
            out = jnp.maximum(out, jnp.where(col >= s, _shift(m, -s, -1), 0.0))

        o_ref[...] = out[:, None, :, :].astype(o_ref.dtype)  # narrow at store

    return kernel


# ---------------------------------------------------------------------------
# generation-aware launch parameters
# ---------------------------------------------------------------------------
def _tpu_generation_params():
    """Returns (block_budget_bytes, vmem_limit_bytes, two_tensorcores)."""
    try:
        vmem = int(pltpu.get_tpu_info().vmem_capacity_bytes)
    except Exception:
        vmem = 128 * 1024 * 1024
    if vmem <= 72 * 1024 * 1024:
        # v7x-class: 64 MiB VMEM per TC, 2 TensorCores -> leave double-buffer
        # headroom and keep an even number of parallel grid steps.
        return 20 * 1024 * 1024, 48 * 1024 * 1024, True
    # v5e / v6e: 128 MiB VMEM, single TC -> biggest single block wins.
    return 56 * 1024 * 1024, 64 * 1024 * 1024, False


def _pick_batch_block(N, per_image_bytes, budget_bytes, two_cores):
    cap = max(1, budget_bytes // max(per_image_bytes, 1))
    divisors = [d for d in range(1, N + 1) if N % d == 0 and d <= cap]
    if not divisors:
        divisors = [1]
    if two_cores:
        even_steps = [d for d in divisors if (N // d) % 2 == 0]
        if even_steps:                       # balanced across both TensorCores
            return max(even_steps)
        multi = [d for d in divisors if N // d >= 2]
        if multi:
            return max(multi)
    return max(divisors)


def edge_detector(rgb, param_edge_thresh, param_edge_dilate,
                  out_dtype=jnp.float32):
    """rgb: (N, 3, H, W) in any real dtype (cast to f32 inside the kernel).
    param_edge_thresh: python float (static). param_edge_dilate: static odd int."""
    N, C, H, W = rgb.shape
    assert C == 3
    assert H >= 2 and W >= 2, "1-px reflection padding needs H, W >= 2"
    dilate = int(param_edge_dilate)
    assert dilate % 2 == 1, "only odd dilation kernel sizes are supported"

    in_b = jnp.dtype(rgb.dtype).itemsize
    out_b = jnp.dtype(out_dtype).itemsize
    budget, vmem_limit, two_cores = _tpu_generation_params()
    # Rough per-image VMEM peak: double-buffered in/out blocks + ~14 live f32
    # (Bt, H, W) temporaries during the Sobel/pool phases.
    per_image = H * W * (2 * 3 * in_b + 2 * out_b + 14 * 4)
    bt = _pick_batch_block(N, per_image, budget, two_cores)

    kernel = _make_edge_kernel(dilate, float(param_edge_thresh))

    return pl.pallas_call(
        kernel,
        out_shape=jax.ShapeDtypeStruct((N, 1, H, W), out_dtype),
        grid=(N // bt,),
        in_specs=[pl.BlockSpec((bt, 3, H, W), lambda n: (n, 0, 0, 0))],
        out_specs=pl.BlockSpec((bt, 1, H, W), lambda n: (n, 0, 0, 0)),
        compiler_params=pltpu.CompilerParams(
            dimension_semantics=("parallel",),
            vmem_limit_bytes=vmem_limit),
    )(rgb)


# ---------------------------------------------------------------------------
# independent NumPy reference mirroring the PyTorch forward
# ---------------------------------------------------------------------------
def edge_detector_ref_np(rgb, thresh, dilate):
    rgb = np.asarray(rgb, dtype=np.float32)
    N, C, H, W = rgb.shape
    x = np.pad(rgb, ((0, 0), (0, 0), (1, 1), (1, 1)), mode="reflect")
    kh = np.array([[-1, 0, 1], [-2, 0, 2], [-1, 0, 1]], np.float32)
    kv = np.array([[-1, -2, -1], [0, 0, 0], [1, 2, 1]], np.float32)
    eh = np.zeros((N, C, H, W), np.float32)
    ev = np.zeros((N, C, H, W), np.float32)
    for ki in range(3):
        for kj in range(3):
            win = x[:, :, ki:ki + H, kj:kj + W]
            eh += kh[ki, kj] * win
            ev += kv[ki, kj] * win
    edge = np.maximum(np.abs(eh), np.abs(ev)).mean(axis=1, keepdims=True)
    edge = (edge > thresh).astype(np.float32)
    pad = dilate // 2
    Ho = H + 2 * pad - dilate + 1
    Wo = W + 2 * pad - dilate + 1
    padded = np.full((N, 1, H + 2 * pad, W + 2 * pad), -np.inf, np.float32)
    padded[:, :, pad:pad + H, pad:pad + W] = edge
    out = np.zeros((N, 1, Ho, Wo), np.float32)
    for i in range(Ho):
        for j in range(Wo):
            out[:, :, i, j] = padded[:, :, i:i + dilate, j:j + dilate].max(axis=(2, 3))
    return out


if __name__ == "__main__":
    key = jax.random.PRNGKey(0)
    # Small demo shape; W = 128 keeps the lane axis a full vreg width so
    # rotates and output stores are lane-dense (see W < 128 TODO above).
    N, C, H, W = 2, 3, 16, 128
    rgb = jax.random.uniform(key, (N, C, H, W), dtype=jnp.float32)
    param_edge_thresh = 0.5

    for param_edge_dilate in (3, 5):            # static (odd) pool kernel sizes
        out = jax.block_until_ready(
            edge_detector(rgb, param_edge_thresh, param_edge_dilate))
        ref = edge_detector_ref_np(np.asarray(rgb), param_edge_thresh,
                                   param_edge_dilate)
        np.testing.assert_allclose(np.asarray(out), ref, atol=1e-6)

    # Narrow-I/O path (bf16 in, bf16 out): output must still be a {0,1} mask.
    out_bf16 = jax.block_until_ready(
        edge_detector(rgb.astype(jnp.bfloat16), param_edge_thresh, 3,
                      out_dtype=jnp.bfloat16))
    ob = np.asarray(out_bf16, dtype=np.float32)
    assert ob.shape == (N, 1, H, W)
    assert np.all((ob == 0.0) | (ob == 1.0))

    print("KERNEL_OK")
</pallas_src>

<mosaic_0001>
module attributes {stable_mosaic.version = 11 : i64} {
  func.func @kernel(%arg0: i32, %arg1: memref<2x3x16x128xf32, #tpu.memory_space<vmem>>, %arg2: memref<2x1x16x128xf32, #tpu.memory_space<vmem>>) attributes {dimension_semantics = [#tpu.dimension_semantics<parallel>], iteration_bounds = array<i64: 1>, scalar_prefetch = 0 : i64, scratch_operands = 0 : i64, tpu.core_type = #tpu.core_type<tc>, window_params = [{transform_indices = @transform_0, window_bounds = array<i64: 2, 3, 16, 128>}, {transform_indices = @transform_1, window_bounds = array<i64: 2, 1, 16, 128>}]} {
    %0 = tpu.iota {dimensions = array<i32: 0>} : vector<16x128xi32>
    %1 = tpu.iota {dimensions = array<i32: 1>} : vector<16x128xi32>
    %c0_i32 = arith.constant 0 : i32
    %2 = vector.broadcast %c0_i32 : i32 to vector<16x128xi32>
    %3 = arith.cmpi eq, %0, %2 : vector<16x128xi32>
    %c15_i32 = arith.constant 15 : i32
    %4 = vector.broadcast %c15_i32 : i32 to vector<16x128xi32>
    %5 = arith.cmpi eq, %0, %4 : vector<16x128xi32>
    %c0_i32_0 = arith.constant 0 : i32
    %6 = vector.broadcast %c0_i32_0 : i32 to vector<16x128xi32>
    %7 = arith.cmpi eq, %1, %6 : vector<16x128xi32>
    %c127_i32 = arith.constant 127 : i32
    %8 = vector.broadcast %c127_i32 : i32 to vector<16x128xi32>
    %9 = arith.cmpi eq, %1, %8 : vector<16x128xi32>
    %cst = arith.constant 0.000000e+00 : f32
    %10 = vector.broadcast %cst : f32 to vector<2x16x128xf32>
    %c0 = arith.constant 0 : index
    %c0_1 = arith.constant 0 : index
    %c0_2 = arith.constant 0 : index
    %c0_3 = arith.constant 0 : index
    %11 = vector.load %arg1[%c0, %c0_1, %c0_2, %c0_3] : memref<2x3x16x128xf32, #tpu.memory_space<vmem>>, vector<2x1x16x128xf32>
    %12 = vector.shape_cast %11 : vector<2x1x16x128xf32> to vector<2x16x128xf32>
    %c127_i32_4 = arith.constant 127 : i32
    %13 = tpu.dynamic_rotate %12 by %c127_i32_4 dim 2 : vector<2x16x128xf32>, i32 -> vector<2x16x128xf32>
    %c1_i32 = arith.constant 1 : i32
    %14 = tpu.dynamic_rotate %12 by %c1_i32 dim 2 : vector<2x16x128xf32>, i32 -> vector<2x16x128xf32>
    %15 = vector.shape_cast %9 : vector<16x128xi1> to vector<1x16x128xi1>
    %16 = vector.broadcast %15 : vector<1x16x128xi1> to vector<2x16x128xi1>
    %17 = arith.select %16, %14, %13 : vector<2x16x128xi1>, vector<2x16x128xf32>
    %18 = vector.shape_cast %7 : vector<16x128xi1> to vector<1x16x128xi1>
    %19 = vector.broadcast %18 : vector<1x16x128xi1> to vector<2x16x128xi1>
    %20 = arith.select %19, %13, %14 : vector<2x16x128xi1>, vector<2x16x128xf32>
    %21 = arith.subf %17, %20 : vector<2x16x128xf32>
    %cst_5 = arith.constant 2.000000e+00 : f32
    %22 = vector.broadcast %cst_5 : f32 to vector<2x16x128xf32>
    %23 = arith.mulf %22, %12 : vector<2x16x128xf32>
    %24 = arith.addf %17, %23 : vector<2x16x128xf32>
    %25 = arith.addf %24, %20 : vector<2x16x128xf32>
    %c15_i32_6 = arith.constant 15 : i32
    %26 = tpu.dynamic_rotate %21 by %c15_i32_6 dim 1 : vector<2x16x128xf32>, i32 -> vector<2x16x128xf32>
    %c1_i32_7 = arith.constant 1 : i32
    %27 = tpu.dynamic_rotate %21 by %c1_i32_7 dim 1 : vector<2x16x128xf32>, i32 -> vector<2x16x128xf32>
    %28 = vector.shape_cast %5 : vector<16x128xi1> to vector<1x16x128xi1>
    %29 = vector.broadcast %28 : vector<1x16x128xi1> to vector<2x16x128xi1>
    %30 = arith.select %29, %27, %26 : vector<2x16x128xi1>, vector<2x16x128xf32>
    %31 = vector.shape_cast %3 : vector<16x128xi1> to vector<1x16x128xi1>
    %32 = vector.broadcast %31 : vector<1x16x128xi1> to vector<2x16x128xi1>
    %33 = arith.select %32, %26, %27 : vector<2x16x128xi1>, vector<2x16x128xf32>
    %c15_i32_8 = arith.constant 15 : i32
    %34 = tpu.dynamic_rotate %25 by %c15_i32_8 dim 1 : vector<2x16x128xf32>, i32 -> vector<2x16x128xf32>
    %c1_i32_9 = arith.constant 1 : i32
    %35 = tpu.dynamic_rotate %25 by %c1_i32_9 dim 1 : vector<2x16x128xf32>, i32 -> vector<2x16x128xf32>
    %36 = vector.shape_cast %5 : vector<16x128xi1> to vector<1x16x128xi1>
    %37 = vector.broadcast %36 : vector<1x16x128xi1> to vector<2x16x128xi1>
    %38 = arith.select %37, %35, %34 : vector<2x16x128xi1>, vector<2x16x128xf32>
    %39 = vector.shape_cast %3 : vector<16x128xi1> to vector<1x16x128xi1>
    %40 = vector.broadcast %39 : vector<1x16x128xi1> to vector<2x16x128xi1>
    %41 = arith.select %40, %34, %35 : vector<2x16x128xi1>, vector<2x16x128xf32>
    %cst_10 = arith.constant 2.000000e+00 : f32
    %42 = vector.broadcast %cst_10 : f32 to vector<2x16x128xf32>
    %43 = arith.mulf %42, %21 : vector<2x16x128xf32>
    %44 = arith.addf %30, %43 : vector<2x16x128xf32>
    %45 = arith.addf %44, %33 : vector<2x16x128xf32>
    %46 = arith.subf %38, %41 : vector<2x16x128xf32>
    %47 = math.absf %45 : vector<2x16x128xf32>
    %48 = math.absf %46 : vector<2x16x128xf32>
    %49 = arith.maximumf %47, %48 : vector<2x16x128xf32>
    %50 = arith.addf %10, %49 : vector<2x16x128xf32>
    %c0_11 = arith.constant 0 : index
    %c1 = arith.constant 1 : index
    %c0_12 = arith.constant 0 : index
    %c0_13 = arith.constant 0 : index
    %51 = vector.load %arg1[%c0_11, %c1, %c0_12, %c0_13] : memref<2x3x16x128xf32, #tpu.memory_space<vmem>>, vector<2x1x16x128xf32>
    %52 = vector.shape_cast %51 : vector<2x1x16x128xf32> to vector<2x16x128xf32>
    %c127_i32_14 = arith.constant 127 : i32
    %53 = tpu.dynamic_rotate %52 by %c127_i32_14 dim 2 : vector<2x16x128xf32>, i32 -> vector<2x16x128xf32>
    %c1_i32_15 = arith.constant 1 : i32
    %54 = tpu.dynamic_rotate %52 by %c1_i32_15 dim 2 : vector<2x16x128xf32>, i32 -> vector<2x16x128xf32>
    %55 = vector.shape_cast %9 : vector<16x128xi1> to vector<1x16x128xi1>
    %56 = vector.broadcast %55 : vector<1x16x128xi1> to vector<2x16x128xi1>
    %57 = arith.select %56, %54, %53 : vector<2x16x128xi1>, vector<2x16x128xf32>
    %58 = vector.shape_cast %7 : vector<16x128xi1> to vector<1x16x128xi1>
    %59 = vector.broadcast %58 : vector<1x16x128xi1> to vector<2x16x128xi1>
    %60 = arith.select %59, %53, %54 : vector<2x16x128xi1>, vector<2x16x128xf32>
    %61 = arith.subf %57, %60 : vector<2x16x128xf32>
    %cst_16 = arith.constant 2.000000e+00 : f32
    %62 = vector.broadcast %cst_16 : f32 to vector<2x16x128xf32>
    %63 = arith.mulf %62, %52 : vector<2x16x128xf32>
    %64 = arith.addf %57, %63 : vector<2x16x128xf32>
    %65 = arith.addf %64, %60 : vector<2x16x128xf32>
    %c15_i32_17 = arith.constant 15 : i32
    %66 = tpu.dynamic_rotate %61 by %c15_i32_17 dim 1 : vector<2x16x128xf32>, i32 -> vector<2x16x128xf32>
    %c1_i32_18 = arith.constant 1 : i32
    %67 = tpu.dynamic_rotate %61 by %c1_i32_18 dim 1 : vector<2x16x128xf32>, i32 -> vector<2x16x128xf32>
    %68 = vector.shape_cast %5 : vector<16x128xi1> to vector<1x16x128xi1>
    %69 = vector.broadcast %68 : vector<1x16x128xi1> to vector<2x16x128xi1>
    %70 = arith.select %69, %67, %66 : vector<2x16x128xi1>, vector<2x16x128xf32>
    %71 = vector.shape_cast %3 : vector<16x128xi1> to vector<1x16x128xi1>
    %72 = vector.broadcast %71 : vector<1x16x128xi1> to vector<2x16x128xi1>
    %73 = arith.select %72, %66, %67 : vector<2x16x128xi1>, vector<2x16x128xf32>
    %c15_i32_19 = arith.constant 15 : i32
    %74 = tpu.dynamic_rotate %65 by %c15_i32_19 dim 1 : vector<2x16x128xf32>, i32 -> vector<2x16x128xf32>
    %c1_i32_20 = arith.constant 1 : i32
    %75 = tpu.dynamic_rotate %65 by %c1_i32_20 dim 1 : vector<2x16x128xf32>, i32 -> vector<2x16x128xf32>
    %76 = vector.shape_cast %5 : vector<16x128xi1> to vector<1x16x128xi1>
    %77 = vector.broadcast %76 : vector<1x16x128xi1> to vector<2x16x128xi1>
    %78 = arith.select %77, %75, %74 : vector<2x16x128xi1>, vector<2x16x128xf32>
    %79 = vector.shape_cast %3 : vector<16x128xi1> to vector<1x16x128xi1>
    %80 = vector.broadcast %79 : vector<1x16x128xi1> to vector<2x16x128xi1>
    %81 = arith.select %80, %74, %75 : vector<2x16x128xi1>, vector<2x16x128xf32>
    %cst_21 = arith.constant 2.000000e+00 : f32
    %82 = vector.broadcast %cst_21 : f32 to vector<2x16x128xf32>
    %83 = arith.mulf %82, %61 : vector<2x16x128xf32>
    %84 = arith.addf %70, %83 : vector<2x16x128xf32>
    %85 = arith.addf %84, %73 : vector<2x16x128xf32>
    %86 = arith.subf %78, %81 : vector<2x16x128xf32>
    %87 = math.absf %85 : vector<2x16x128xf32>
    %88 = math.absf %86 : vector<2x16x128xf32>
    %89 = arith.maximumf %87, %88 : vector<2x16x128xf32>
    %90 = arith.addf %50, %89 : vector<2x16x128xf32>
    %c0_22 = arith.constant 0 : index
    %c2 = arith.constant 2 : index
    %c0_23 = arith.constant 0 : index
    %c0_24 = arith.constant 0 : index
    %91 = vector.load %arg1[%c0_22, %c2, %c0_23, %c0_24] : memref<2x3x16x128xf32, #tpu.memory_space<vmem>>, vector<2x1x16x128xf32>
    %92 = vector.shape_cast %91 : vector<2x1x16x128xf32> to vector<2x16x128xf32>
    %c127_i32_25 = arith.constant 127 : i32
    %93 = tpu.dynamic_rotate %92 by %c127_i32_25 dim 2 : vector<2x16x128xf32>, i32 -> vector<2x16x128xf32>
    %c1_i32_26 = arith.constant 1 : i32
    %94 = tpu.dynamic_rotate %92 by %c1_i32_26 dim 2 : vector<2x16x128xf32>, i32 -> vector<2x16x128xf32>
    %95 = vector.shape_cast %9 : vector<16x128xi1> to vector<1x16x128xi1>
    %96 = vector.broadcast %95 : vector<1x16x128xi1> to vector<2x16x128xi1>
    %97 = arith.select %96, %94, %93 : vector<2x16x128xi1>, vector<2x16x128xf32>
    %98 = vector.shape_cast %7 : vector<16x128xi1> to vector<1x16x128xi1>
    %99 = vector.broadcast %98 : vector<1x16x128xi1> to vector<2x16x128xi1>
    %100 = arith.select %99, %93, %94 : vector<2x16x128xi1>, vector<2x16x128xf32>
    %101 = arith.subf %97, %100 : vector<2x16x128xf32>
    %cst_27 = arith.constant 2.000000e+00 : f32
    %102 = vector.broadcast %cst_27 : f32 to vector<2x16x128xf32>
    %103 = arith.mulf %102, %92 : vector<2x16x128xf32>
    %104 = arith.addf %97, %103 : vector<2x16x128xf32>
    %105 = arith.addf %104, %100 : vector<2x16x128xf32>
    %c15_i32_28 = arith.constant 15 : i32
    %106 = tpu.dynamic_rotate %101 by %c15_i32_28 dim 1 : vector<2x16x128xf32>, i32 -> vector<2x16x128xf32>
    %c1_i32_29 = arith.constant 1 : i32
    %107 = tpu.dynamic_rotate %101 by %c1_i32_29 dim 1 : vector<2x16x128xf32>, i32 -> vector<2x16x128xf32>
    %108 = vector.shape_cast %5 : vector<16x128xi1> to vector<1x16x128xi1>
    %109 = vector.broadcast %108 : vector<1x16x128xi1> to vector<2x16x128xi1>
    %110 = arith.select %109, %107, %106 : vector<2x16x128xi1>, vector<2x16x128xf32>
    %111 = vector.shape_cast %3 : vector<16x128xi1> to vector<1x16x128xi1>
    %112 = vector.broadcast %111 : vector<1x16x128xi1> to vector<2x16x128xi1>
    %113 = arith.select %112, %106, %107 : vector<2x16x128xi1>, vector<2x16x128xf32>
    %c15_i32_30 = arith.constant 15 : i32
    %114 = tpu.dynamic_rotate %105 by %c15_i32_30 dim 1 : vector<2x16x128xf32>, i32 -> vector<2x16x128xf32>
    %c1_i32_31 = arith.constant 1 : i32
    %115 = tpu.dynamic_rotate %105 by %c1_i32_31 dim 1 : vector<2x16x128xf32>, i32 -> vector<2x16x128xf32>
    %116 = vector.shape_cast %5 : vector<16x128xi1> to vector<1x16x128xi1>
    %117 = vector.broadcast %116 : vector<1x16x128xi1> to vector<2x16x128xi1>
    %118 = arith.select %117, %115, %114 : vector<2x16x128xi1>, vector<2x16x128xf32>
    %119 = vector.shape_cast %3 : vector<16x128xi1> to vector<1x16x128xi1>
    %120 = vector.broadcast %119 : vector<1x16x128xi1> to vector<2x16x128xi1>
    %121 = arith.select %120, %114, %115 : vector<2x16x128xi1>, vector<2x16x128xf32>
    %cst_32 = arith.constant 2.000000e+00 : f32
    %122 = vector.broadcast %cst_32 : f32 to vector<2x16x128xf32>
    %123 = arith.mulf %122, %101 : vector<2x16x128xf32>
    %124 = arith.addf %110, %123 : vector<2x16x128xf32>
    %125 = arith.addf %124, %113 : vector<2x16x128xf32>
    %126 = arith.subf %118, %121 : vector<2x16x128xf32>
    %127 = math.absf %125 : vector<2x16x128xf32>
    %128 = math.absf %126 : vector<2x16x128xf32>
    %129 = arith.maximumf %127, %128 : vector<2x16x128xf32>
    %130 = arith.addf %90, %129 : vector<2x16x128xf32>
    %cst_33 = arith.constant 1.500000e+00 : f32
    %131 = vector.broadcast %cst_33 : f32 to vector<2x16x128xf32>
    %132 = arith.cmpf ogt, %130, %131 : vector<2x16x128xf32>
    %133 = arith.extui %132 : vector<2x16x128xi1> to vector<2x16x128xi32>
    %134 = arith.sitofp %133 : vector<2x16x128xi32> to vector<2x16x128xf32>
    %c15_i32_34 = arith.constant 15 : i32
    %135 = vector.broadcast %c15_i32_34 : i32 to vector<16x128xi32>
    %136 = arith.cmpi slt, %0, %135 : vector<16x128xi32>
    %c15_i32_35 = arith.constant 15 : i32
    %137 = tpu.dynamic_rotate %134 by %c15_i32_35 dim 1 : vector<2x16x128xf32>, i32 -> vector<2x16x128xf32>
    %cst_36 = arith.constant 0.000000e+00 : f32
    %138 = vector.shape_cast %136 : vector<16x128xi1> to vector<1x16x128xi1>
    %139 = vector.broadcast %138 : vector<1x16x128xi1> to vector<2x16x128xi1>
    %140 = vector.broadcast %cst_36 : f32 to vector<2x16x128xf32>
    %141 = arith.select %139, %137, %140 : vector<2x16x128xi1>, vector<2x16x128xf32>
    %142 = arith.maximumf %134, %141 : vector<2x16x128xf32>
    %c1_i32_37 = arith.constant 1 : i32
    %143 = vector.broadcast %c1_i32_37 : i32 to vector<16x128xi32>
    %144 = arith.cmpi sge, %0, %143 : vector<16x128xi32>
    %c1_i32_38 = arith.constant 1 : i32
    %145 = tpu.dynamic_rotate %134 by %c1_i32_38 dim 1 : vector<2x16x128xf32>, i32 -> vector<2x16x128xf32>
    %cst_39 = arith.constant 0.000000e+00 : f32
    %146 = vector.shape_cast %144 : vector<16x128xi1> to vector<1x16x128xi1>
    %147 = vector.broadcast %146 : vector<1x16x128xi1> to vector<2x16x128xi1>
    %148 = vector.broadcast %cst_39 : f32 to vector<2x16x128xf32>
    %149 = arith.select %147, %145, %148 : vector<2x16x128xi1>, vector<2x16x128xf32>
    %150 = arith.maximumf %142, %149 : vector<2x16x128xf32>
    %c127_i32_40 = arith.constant 127 : i32
    %151 = vector.broadcast %c127_i32_40 : i32 to vector<16x128xi32>
    %152 = arith.cmpi slt, %1, %151 : vector<16x128xi32>
    %c127_i32_41 = arith.constant 127 : i32
    %153 = tpu.dynamic_rotate %150 by %c127_i32_41 dim 2 : vector<2x16x128xf32>, i32 -> vector<2x16x128xf32>
    %cst_42 = arith.constant 0.000000e+00 : f32
    %154 = vector.shape_cast %152 : vector<16x128xi1> to vector<1x16x128xi1>
    %155 = vector.broadcast %154 : vector<1x16x128xi1> to vector<2x16x128xi1>
    %156 = vector.broadcast %cst_42 : f32 to vector<2x16x128xf32>
    %157 = arith.select %155, %153, %156 : vector<2x16x128xi1>, vector<2x16x128xf32>
    %158 = arith.maximumf %150, %157 : vector<2x16x128xf32>
    %c1_i32_43 = arith.constant 1 : i32
    %159 = vector.broadcast %c1_i32_43 : i32 to vector<16x128xi32>
    %160 = arith.cmpi sge, %1, %159 : vector<16x128xi32>
    %c1_i32_44 = arith.constant 1 : i32
    %161 = tpu.dynamic_rotate %150 by %c1_i32_44 dim 2 : vector<2x16x128xf32>, i32 -> vector<2x16x128xf32>
    %cst_45 = arith.constant 0.000000e+00 : f32
    %162 = vector.shape_cast %160 : vector<16x128xi1> to vector<1x16x128xi1>
    %163 = vector.broadcast %162 : vector<1x16x128xi1> to vector<2x16x128xi1>
    %164 = vector.broadcast %cst_45 : f32 to vector<2x16x128xf32>
    %165 = arith.select %163, %161, %164 : vector<2x16x128xi1>, vector<2x16x128xf32>
    %166 = arith.maximumf %158, %165 : vector<2x16x128xf32>
    %167 = vector.shape_cast %166 : vector<2x16x128xf32> to vector<2x1x16x128xf32>
    %c0_46 = arith.constant 0 : index
    %c0_47 = arith.constant 0 : index
    %c0_48 = arith.constant 0 : index
    %c0_49 = arith.constant 0 : index
    %168 = vector.load %arg2[%c0_46, %c0_47, %c0_48, %c0_49] : memref<2x1x16x128xf32, #tpu.memory_space<vmem>>, vector<2x1x16x128xf32>
    tpu.vector_store %arg2[%c0_46, %c0_47, %c0_48, %c0_49], %167 {strides = array<i32>} : memref<2x1x16x128xf32, #tpu.memory_space<vmem>>, vector<2x1x16x128xf32>,
    return
  }
  func.func @transform_0(%arg0: i32) -> (i32, i32, i32, i32) {
    %c0_i32 = arith.constant 0 : i32
    %c0_i32_0 = arith.constant 0 : i32
    %c0_i32_1 = arith.constant 0 : i32
    %c0_i32_2 = arith.constant 0 : i32
    return %arg0, %c0_i32, %c0_i32_0, %c0_i32_1 : i32, i32, i32, i32
  }
  func.func @transform_1(%arg0: i32) -> (i32, i32, i32, i32) {
    %c0_i32 = arith.constant 0 : i32
    %c0_i32_0 = arith.constant 0 : i32
    %c0_i32_1 = arith.constant 0 : i32
    %c0_i32_2 = arith.constant 0 : i32
    return %arg0, %c0_i32, %c0_i32_0, %c0_i32_1 : i32, i32, i32, i32
  }
}

</mosaic_0001>

<llo_original>
// kernel: tpu_custom_call.1
$region0: #{tpu_custom_call.1}
  #allocation0 [shape = 'u32[]', space=smem, size = 0x4, offset = 0x4, fixed_abs, tag = 'smem constant byte address 0x4 - core index']
  #allocation1 [shape = 'u32[144,128]{1,0:T(1,128)}', space=vmem, size = 0x12000, scoped, tag = 'internal scratch']
  %s0 = inlined_call_operand.hbm [shape: f32[2,3,16,128], index: 0, kind: input, shape index: {}]
  %s1 = inlined_call_operand.hbm [shape: f32[2,1,16,128], index: 1, kind: output, shape index: {}]
  %s2 = sld [smem:[#allocation0]]
  $region18: #{tpu_custom_call.1} parent=0
    _
  %s4 = ssub.s32 1, %s2
  %s5 = scalar_select 0, %s4, %s2
  $region1: #{tpu_custom_call.1} parent=0
    #allocation2 [shape = 'u8[49152]{0}', space=vmem, size = 0xc000, scoped, tag = 'input window, operand 0, single buffered']
    #allocation3 [shape = 's32[1]{0}', space=sflag, size = 0x4, scoped, tag = 'scoped memory for tpu_custom_call.1']
    #allocation4 [shape = 's32[1]{0}', space=sflag, size = 0x4, scoped, tag = 'scoped memory for tpu_custom_call.1']
    #allocation5 [shape = 'u8[16384]{0}', space=vmem, size = 0x4000, scoped, tag = 'output window, operand 0, single buffered']
    %6 = vsyncpa [#allocation3], 0
    %7 = vsyncpa [#allocation4], 0
    // Predicated region
    $region2: #{tpu_custom_call.1} parent=1 // pred_check
      _
    $region3: #{tpu_custom_call.1} parent=1 // pred_check_branch
      %9 = sbr.rel (0) target = $region5
    $region4: #{tpu_custom_call.1} parent=1 // pred_region
      %s11 = ssub.s32 1536, 1536
      %12 = vsyncadd [#allocation3], %s11
      %s13 = sshll.u32 [#allocation2], 4
      %s14 = int_to_ptr.vmem [resolvable:$true] %s13
      %19 = dma.hbm_to_vmem [thread:$0]  %s0, 1536, %s14, [#allocation3], 128, 128, 8
    $region5: #{tpu_custom_call.1} parent=1 // pred_fallthru
      _
    // Predicated region
    $region6: #{tpu_custom_call.1} parent=1 // pred_check
      _
    $region7: #{tpu_custom_call.1} parent=1 // pred_check_branch
      %21 = sbr.rel (0) target = $region9
    $region8: #{tpu_custom_call.1} parent=1 // pred_region
      %22 = dma.done [#allocation3], 1536
    $region9: #{tpu_custom_call.1} parent=1 // pred_fallthru
      _
    %v23 = vlaneseq
    %v24 = vshrl.u32 %v23, 7
    %v25 = vadd.s32 %v24, 8
    %v26 = vlaneseq
    %v27 = vand.u32 %v26, 127
    %vm28 = vcmp.eq.s32.totalorder %v24, 0
    %vm29 = vcmp.eq.s32.totalorder %v25, 0
    %vm30 = vcmp.eq.s32.totalorder %v24, 15
    %vm31 = vcmp.eq.s32.totalorder %v25, 15
    %vm32 = vcmp.eq.s32.totalorder %v27, 0
    %vm33 = vcmp.eq.s32.totalorder %v27, 127
    %v34 = vld [vmem:[#allocation2] sm:$0xff]
    %v35 = vld [vmem:[#allocation2 + $0x8] sm:$0xff]
    %v36 = vld [vmem:[#allocation2 + $0x30] sm:$0xff]
    %v37 = vld [vmem:[#allocation2 + $0x38] sm:$0xff]
    %38 = vrot.lane.b32.xlu0 %v34, 127
    %v39 = vpop.permute.xlu0 %38
    %40 = vrot.lane.b32.xlu0 %v35, 127
    %v41 = vpop.permute.xlu0 %40
    %42 = vrot.lane.b32.xlu0 %v36, 127
    %v43 = vpop.permute.xlu0 %42
    %44 = vrot.lane.b32.xlu0 %v37, 127
    %v45 = vpop.permute.xlu0 %44
    %46 = vrot.lane.b32.xlu0 %v34, 1
    %v47 = vpop.permute.xlu0 %46
    %48 = vrot.lane.b32.xlu0 %v35, 1
    %v49 = vpop.permute.xlu0 %48
    %50 = vrot.lane.b32.xlu0 %v36, 1
    %v51 = vpop.permute.xlu0 %50
    %52 = vrot.lane.b32.xlu0 %v37, 1
    %v53 = vpop.permute.xlu0 %52
    %v54 = vsel %vm33, 1, 0
    %vm55 = vcmp.eq.s32.totalorder %v54, 1
    %v56 = vsel %vm55, %v47, %v39
    %v57 = vsel %vm55, %v49, %v41
    %v58 = vsel %vm55, %v51, %v43
    %v59 = vsel %vm55, %v53, %v45
    %v60 = vsel %vm32, 1, 0
    %vm61 = vcmp.eq.s32.totalorder %v60, 1
    %v62 = vsel %vm61, %v39, %v47
    %v63 = vsel %vm61, %v41, %v49
    %v64 = vsel %vm61, %v43, %v51
    %v65 = vsel %vm61, %v45, %v53
    %v66 = vsub.f32 %v56, %v62
    %v67 = vsub.f32 %v57, %v63
    %v68 = vsub.f32 %v58, %v64
    %v69 = vsub.f32 %v59, %v65
    %v70 = vmul.f32 %v34, 2.0
    %v71 = vmul.f32 %v35, 2.0
    %v72 = vmul.f32 %v36, 2.0
    %v73 = vmul.f32 %v37, 2.0
    %v74 = vadd.f32 %v56, %v70
    %v75 = vadd.f32 %v57, %v71
    %v76 = vadd.f32 %v58, %v72
    %v77 = vadd.f32 %v59, %v73
    %v78 = vadd.f32 %v74, %v62
    %v79 = vadd.f32 %v75, %v63
    %v80 = vadd.f32 %v76, %v64
    %v81 = vadd.f32 %v77, %v65
    %v82 = vrot.slane %v66, 1
    %v83 = vrot.slane %v68, 1
    %v84 = vrot.slane %v67, 1
    %v85 = vrot.slane %v69, 1
    %vm86 = vcmp.lt.s32.totalorder %v24, 7
    %v87 = vsel %vm86, %v82, %v84
    %v88 = vsel %vm86, %v83, %v85
    %v89 = vsel %vm86, %v84, %v82
    %v90 = vsel %vm86, %v85, %v83
    %v91 = vrot.slane %v66, 7
    %v92 = vrot.slane %v68, 7
    %v93 = vrot.slane %v67, 7
    %v94 = vrot.slane %v69, 7
    %vm95 = vcmp.lt.s32.totalorder %v24, 1
    %v96 = vsel %vm95, %v91, %v93
    %v97 = vsel %vm95, %v92, %v94
    %v98 = vsel %vm95, %v93, %v91
    %v99 = vsel %vm95, %v94, %v92
    %v100 = vsel %vm30, 1, 0
    %v101 = vsel %vm31, 1, 0
    %vm102 = vcmp.eq.s32.totalorder %v100, 1
    %vm103 = vcmp.eq.s32.totalorder %v101, 1
    %v104 = vsel %vm102, %v98, %v87
    %v105 = vsel %vm103, %v96, %v89
    %v106 = vsel %vm102, %v99, %v88
    %v107 = vsel %vm103, %v97, %v90
    %v108 = vsel %vm28, 1, 0
    %v109 = vsel %vm29, 1, 0
    %vm110 = vcmp.eq.s32.totalorder %v108, 1
    %vm111 = vcmp.eq.s32.totalorder %v109, 1
    %v112 = vsel %vm110, %v87, %v98
    %v113 = vsel %vm111, %v89, %v96
    %v114 = vsel %vm110, %v88, %v99
    %v115 = vsel %vm111, %v90, %v97
    %v116 = vrot.slane %v78, 1
    %v117 = vrot.slane %v80, 1
    %v118 = vrot.slane %v79, 1
    %v119 = vrot.slane %v81, 1
    %v120 = vsel %vm86, %v116, %v118
    %v121 = vsel %vm86, %v117, %v119
    %v122 = vsel %vm86, %v118, %v116
    %v123 = vsel %vm86, %v119, %v117
    %v124 = vrot.slane %v78, 7
    %v125 = vrot.slane %v80, 7
    %v126 = vrot.slane %v79, 7
    %v127 = vrot.slane %v81, 7
    %v128 = vsel %vm95, %v124, %v126
    %v129 = vsel %vm95, %v125, %v127
    %v130 = vsel %vm95, %v126, %v124
    %v131 = vsel %vm95, %v127, %v125
    %v132 = vsel %vm102, %v130, %v120
    %v133 = vsel %vm103, %v128, %v122
    %v134 = vsel %vm102, %v131, %v121
    %v135 = vsel %vm103, %v129, %v123
    %v136 = vsel %vm110, %v120, %v130
    %v137 = vsel %vm111, %v122, %v128
    %v138 = vsel %vm110, %v121, %v131
    %v139 = vsel %vm111, %v123, %v129
    %v140 = vmul.f32 %v66, 2.0
    %v141 = vmul.f32 %v67, 2.0
    %v142 = vmul.f32 %v68, 2.0
    %v143 = vmul.f32 %v69, 2.0
    %v144 = vadd.f32 %v104, %v140
    %v145 = vadd.f32 %v105, %v141
    %v146 = vadd.f32 %v106, %v142
    %v147 = vadd.f32 %v107, %v143
    %v148 = vadd.f32 %v144, %v112
    %v149 = vadd.f32 %v145, %v113
    %v150 = vadd.f32 %v146, %v114
    %v151 = vadd.f32 %v147, %v115
    %v152 = vsub.f32 %v132, %v136
    %v153 = vsub.f32 %v133, %v137
    %v154 = vsub.f32 %v134, %v138
    %v155 = vsub.f32 %v135, %v139
    %v156 = vand.u32 2147483647, %v148
    %v157 = vand.u32 2147483647, %v149
    %v158 = vand.u32 2147483647, %v150
    %v159 = vand.u32 2147483647, %v151
    %v160 = vand.u32 2147483647, %v152
    %v161 = vand.u32 2147483647, %v153
    %v162 = vand.u32 2147483647, %v154
    %v163 = vand.u32 2147483647, %v155
    %v164 = vmax.f32 %v156, %v160
    %v165 = vmax.f32 %v157, %v161
    %v166 = vmax.f32 %v158, %v162
    %v167 = vmax.f32 %v159, %v163
    %v168 = vadd.f32 %v164, 0.0
    %v169 = vadd.f32 %v165, 0.0
    %v170 = vadd.f32 %v166, 0.0
    %v171 = vadd.f32 %v167, 0.0
    %s172 = scalar_lea.vmem [#allocation2], 16
    %v173 = vld [vmem:[%s172] sm:$0xff]
    %v174 = vld [vmem:[%s172 + $0x8] sm:$0xff]
    %v175 = vld [vmem:[%s172 + $0x30] sm:$0xff]
    %v176 = vld [vmem:[%s172 + $0x38] sm:$0xff]
    %177 = vrot.lane.b32.xlu0 %v173, 127
    %v178 = vpop.permute.xlu0 %177
    %179 = vrot.lane.b32.xlu0 %v174, 127
    %v180 = vpop.permute.xlu0 %179
    %181 = vrot.lane.b32.xlu0 %v175, 127
    %v182 = vpop.permute.xlu0 %181
    %183 = vrot.lane.b32.xlu0 %v176, 127
    %v184 = vpop.permute.xlu0 %183
    %185 = vrot.lane.b32.xlu0 %v173, 1
    %v186 = vpop.permute.xlu0 %185
    %187 = vrot.lane.b32.xlu0 %v174, 1
    %v188 = vpop.permute.xlu0 %187
    %189 = vrot.lane.b32.xlu0 %v175, 1
    %v190 = vpop.permute.xlu0 %189
    %191 = vrot.lane.b32.xlu0 %v176, 1
    %v192 = vpop.permute.xlu0 %191
    %v193 = vsel %vm55, %v186, %v178
    %v194 = vsel %vm55, %v188, %v180
    %v195 = vsel %vm55, %v190, %v182
    %v196 = vsel %vm55, %v192, %v184
    %v197 = vsel %vm61, %v178, %v186
    %v198 = vsel %vm61, %v180, %v188
    %v199 = vsel %vm61, %v182, %v190
    %v200 = vsel %vm61, %v184, %v192
    %v201 = vsub.f32 %v193, %v197
    %v202 = vsub.f32 %v194, %v198
    %v203 = vsub.f32 %v195, %v199
    %v204 = vsub.f32 %v196, %v200
    %v205 = vmul.f32 %v173, 2.0
    %v206 = vmul.f32 %v174, 2.0
    %v207 = vmul.f32 %v175, 2.0
    %v208 = vmul.f32 %v176, 2.0
    %v209 = vadd.f32 %v193, %v205
    %v210 = vadd.f32 %v194, %v206
    %v211 = vadd.f32 %v195, %v207
    %v212 = vadd.f32 %v196, %v208
    %v213 = vadd.f32 %v209, %v197
    %v214 = vadd.f32 %v210, %v198
    %v215 = vadd.f32 %v211, %v199
    %v216 = vadd.f32 %v212, %v200
    %v217 = vrot.slane %v201, 1
    %v218 = vrot.slane %v203, 1
    %v219 = vrot.slane %v202, 1
    %v220 = vrot.slane %v204, 1
    %v221 = vsel %vm86, %v217, %v219
    %v222 = vsel %vm86, %v218, %v220
    %v223 = vsel %vm86, %v219, %v217
    %v224 = vsel %vm86, %v220, %v218
    %v225 = vrot.slane %v201, 7
    %v226 = vrot.slane %v203, 7
    %v227 = vrot.slane %v202, 7
    %v228 = vrot.slane %v204, 7
    %v229 = vsel %vm95, %v225, %v227
    %v230 = vsel %vm95, %v226, %v228
    %v231 = vsel %vm95, %v227, %v225
    %v232 = vsel %vm95, %v228, %v226
    %v233 = vsel %vm102, %v231, %v221
    %v234 = vsel %vm103, %v229, %v223
    %v235 = vsel %vm102, %v232, %v222
    %v236 = vsel %vm103, %v230, %v224
    %v237 = vsel %vm110, %v221, %v231
    %v238 = vsel %vm111, %v223, %v229
    %v239 = vsel %vm110, %v222, %v232
    %v240 = vsel %vm111, %v224, %v230
    %v241 = vrot.slane %v213, 1
    %v242 = vrot.slane %v215, 1
    %v243 = vrot.slane %v214, 1
    %v244 = vrot.slane %v216, 1
    %v245 = vsel %vm86, %v241, %v243
    %v246 = vsel %vm86, %v242, %v244
    %v247 = vsel %vm86, %v243, %v241
    %v248 = vsel %vm86, %v244, %v242
    %v249 = vrot.slane %v213, 7
    %v250 = vrot.slane %v215, 7
    %v251 = vrot.slane %v214, 7
    %v252 = vrot.slane %v216, 7
    %v253 = vsel %vm95, %v249, %v251
    %v254 = vsel %vm95, %v250, %v252
    %v255 = vsel %vm95, %v251, %v249
    %v256 = vsel %vm95, %v252, %v250
    %v257 = vsel %vm102, %v255, %v245
    %v258 = vsel %vm103, %v253, %v247
    %v259 = vsel %vm102, %v256, %v246
    %v260 = vsel %vm103, %v254, %v248
    %v261 = vsel %vm110, %v245, %v255
    %v262 = vsel %vm111, %v247, %v253
    %v263 = vsel %vm110, %v246, %v256
    %v264 = vsel %vm111, %v248, %v254
    %v265 = vmul.f32 %v201, 2.0
    %v266 = vmul.f32 %v202, 2.0
    %v267 = vmul.f32 %v203, 2.0
    %v268 = vmul.f32 %v204, 2.0
    %v269 = vadd.f32 %v233, %v265
    %v270 = vadd.f32 %v234, %v266
    %v271 = vadd.f32 %v235, %v267
    %v272 = vadd.f32 %v236, %v268
    %v273 = vadd.f32 %v269, %v237
    %v274 = vadd.f32 %v270, %v238
    %v275 = vadd.f32 %v271, %v239
    %v276 = vadd.f32 %v272, %v240
    %v277 = vsub.f32 %v257, %v261
    %v278 = vsub.f32 %v258, %v262
    %v279 = vsub.f32 %v259, %v263
    %v280 = vsub.f32 %v260, %v264
    %v281 = vand.u32 2147483647, %v273
    %v282 = vand.u32 2147483647, %v274
    %v283 = vand.u32 2147483647, %v275
    %v284 = vand.u32 2147483647, %v276
    %v285 = vand.u32 2147483647, %v277
    %v286 = vand.u32 2147483647, %v278
    %v287 = vand.u32 2147483647, %v279
    %v288 = vand.u32 2147483647, %v280
    %v289 = vmax.f32 %v281, %v285
    %v290 = vmax.f32 %v282, %v286
    %v291 = vmax.f32 %v283, %v287
    %v292 = vmax.f32 %v284, %v288
    %v293 = vadd.f32 %v168, %v289
    %v294 = vadd.f32 %v169, %v290
    %v295 = vadd.f32 %v170, %v291
    %v296 = vadd.f32 %v171, %v292
    %s297 = scalar_lea.vmem [#allocation2], 32
    %v298 = vld [vmem:[%s297] sm:$0xff]
    %v299 = vld [vmem:[%s297 + $0x8] sm:$0xff]
    %v300 = vld [vmem:[%s297 + $0x30] sm:$0xff]
    %v301 = vld [vmem:[%s297 + $0x38] sm:$0xff]
    %302 = vrot.lane.b32.xlu0 %v298, 127
    %v303 = vpop.permute.xlu0 %302
    %304 = vrot.lane.b32.xlu0 %v299, 127
    %v305 = vpop.permute.xlu0 %304
    %306 = vrot.lane.b32.xlu0 %v300, 127
    %v307 = vpop.permute.xlu0 %306
    %308 = vrot.lane.b32.xlu0 %v301, 127
    %v309 = vpop.permute.xlu0 %308
    %310 = vrot.lane.b32.xlu0 %v298, 1
    %v311 = vpop.permute.xlu0 %310
    %312 = vrot.lane.b32.xlu0 %v299, 1
    %v313 = vpop.permute.xlu0 %312
    %314 = vrot.lane.b32.xlu0 %v300, 1
    %v315 = vpop.permute.xlu0 %314
    %316 = vrot.lane.b32.xlu0 %v301, 1
    %v317 = vpop.permute.xlu0 %316
    %v318 = vsel %vm55, %v311, %v303
    %v319 = vsel %vm55, %v313, %v305
    %v320 = vsel %vm55, %v315, %v307
    %v321 = vsel %vm55, %v317, %v309
    %v322 = vsel %vm61, %v303, %v311
    %v323 = vsel %vm61, %v305, %v313
    %v324 = vsel %vm61, %v307, %v315
    %v325 = vsel %vm61, %v309, %v317
    %v326 = vsub.f32 %v318, %v322
    %v327 = vsub.f32 %v319, %v323
    %v328 = vsub.f32 %v320, %v324
    %v329 = vsub.f32 %v321, %v325
    %v330 = vmul.f32 %v298, 2.0
    %v331 = vmul.f32 %v299, 2.0
    %v332 = vmul.f32 %v300, 2.0
    %v333 = vmul.f32 %v301, 2.0
    %v334 = vadd.f32 %v318, %v330
    %v335 = vadd.f32 %v319, %v331
    %v336 = vadd.f32 %v320, %v332
    %v337 = vadd.f32 %v321, %v333
    %v338 = vadd.f32 %v334, %v322
    %v339 = vadd.f32 %v335, %v323
    %v340 = vadd.f32 %v336, %v324
    %v341 = vadd.f32 %v337, %v325
    %v342 = vrot.slane %v326, 1
    %v343 = vrot.slane %v328, 1
    %v344 = vrot.slane %v327, 1
    %v345 = vrot.slane %v329, 1
    %v346 = vsel %vm86, %v342, %v344
    %v347 = vsel %vm86, %v343, %v345
    %v348 = vsel %vm86, %v344, %v342
    %v349 = vsel %vm86, %v345, %v343
    %v350 = vrot.slane %v326, 7
    %v351 = vrot.slane %v328, 7
    %v352 = vrot.slane %v327, 7
    %v353 = vrot.slane %v329, 7
    %v354 = vsel %vm95, %v350, %v352
    %v355 = vsel %vm95, %v351, %v353
    %v356 = vsel %vm95, %v352, %v350
    %v357 = vsel %vm95, %v353, %v351
    %v358 = vsel %vm102, %v356, %v346
    %v359 = vsel %vm103, %v354, %v348
    %v360 = vsel %vm102, %v357, %v347
    %v361 = vsel %vm103, %v355, %v349
    %v362 = vsel %vm110, %v346, %v356
    %v363 = vsel %vm111, %v348, %v354
    %v364 = vsel %vm110, %v347, %v357
    %v365 = vsel %vm111, %v349, %v355
    %v366 = vrot.slane %v338, 1
    %v367 = vrot.slane %v340, 1
    %v368 = vrot.slane %v339, 1
    %v369 = vrot.slane %v341, 1
    %v370 = vsel %vm86, %v366, %v368
    %v371 = vsel %vm86, %v367, %v369
    %v372 = vsel %vm86, %v368, %v366
    %v373 = vsel %vm86, %v369, %v367
    %v374 = vrot.slane %v338, 7
    %v375 = vrot.slane %v340, 7
    %v376 = vrot.slane %v339, 7
    %v377 = vrot.slane %v341, 7
    %v378 = vsel %vm95, %v374, %v376
    %v379 = vsel %vm95, %v375, %v377
    %v380 = vsel %vm95, %v376, %v374
    %v381 = vsel %vm95, %v377, %v375
    %v382 = vsel %vm102, %v380, %v370
    %v383 = vsel %vm103, %v378, %v372
    %v384 = vsel %vm102, %v381, %v371
    %v385 = vsel %vm103, %v379, %v373
    %v386 = vsel %vm110, %v370, %v380
    %v387 = vsel %vm111, %v372, %v378
    %v388 = vsel %vm110, %v371, %v381
    %v389 = vsel %vm111, %v373, %v379
    %v390 = vmul.f32 %v326, 2.0
    %v391 = vmul.f32 %v327, 2.0
    %v392 = vmul.f32 %v328, 2.0
    %v393 = vmul.f32 %v329, 2.0
    %v394 = vadd.f32 %v358, %v390
    %v395 = vadd.f32 %v359, %v391
    %v396 = vadd.f32 %v360, %v392
    %v397 = vadd.f32 %v361, %v393
    %v398 = vadd.f32 %v394, %v362
    %v399 = vadd.f32 %v395, %v363
    %v400 = vadd.f32 %v396, %v364
    %v401 = vadd.f32 %v397, %v365
    %v402 = vsub.f32 %v382, %v386
    %v403 = vsub.f32 %v383, %v387
    %v404 = vsub.f32 %v384, %v388
    %v405 = vsub.f32 %v385, %v389
    %v406 = vand.u32 2147483647, %v398
    %v407 = vand.u32 2147483647, %v399
    %v408 = vand.u32 2147483647, %v400
    %v409 = vand.u32 2147483647, %v401
    %v410 = vand.u32 2147483647, %v402
    %v411 = vand.u32 2147483647, %v403
    %v412 = vand.u32 2147483647, %v404
    %v413 = vand.u32 2147483647, %v405
    %v414 = vmax.f32 %v406, %v410
    %v415 = vmax.f32 %v407, %v411
    %v416 = vmax.f32 %v408, %v412
    %v417 = vmax.f32 %v409, %v413
    %v418 = vadd.f32 %v293, %v414
    %v419 = vadd.f32 %v294, %v415
    %v420 = vadd.f32 %v295, %v416
    %v421 = vadd.f32 %v296, %v417
    %vm422 = vcmp.gt.f32.partialorder %v418, 1.5
    %vm423 = vcmp.gt.f32.partialorder %v419, 1.5
    %vm424 = vcmp.gt.f32.partialorder %v420, 1.5
    %vm425 = vcmp.gt.f32.partialorder %v421, 1.5
    %v426 = vsel %vm422, 1, 0
    %v427 = vsel %vm423, 1, 0
    %v428 = vsel %vm424, 1, 0
    %v429 = vsel %vm425, 1, 0
    %v430 = vcvt.s32.f32 %v426
    %v431 = vcvt.s32.f32 %v427
    %v432 = vcvt.s32.f32 %v428
    %v433 = vcvt.s32.f32 %v429
    %vm434 = vcmp.lt.s32.totalorder %v24, 15
    %vm435 = vcmp.lt.s32.totalorder %v25, 15
    %v436 = vrot.slane %v430, 1
    %v437 = vrot.slane %v432, 1
    %v438 = vrot.slane %v431, 1
    %v439 = vrot.slane %v433, 1
    %v440 = vsel %vm86, %v436, %v438
    %v441 = vsel %vm86, %v437, %v439
    %v442 = vsel %vm86, %v438, %v436
    %v443 = vsel %vm86, %v439, %v437
    %v444 = vsel %vm434, 1, 0
    %v445 = vsel %vm435, 1, 0
    %vm446 = vcmp.eq.s32.totalorder %v444, 1
    %vm447 = vcmp.eq.s32.totalorder %v445, 1
    %v448 = vsel %vm446, %v440, 0.0
    %v449 = vsel %vm447, %v442, 0.0
    %v450 = vsel %vm446, %v441, 0.0
    %v451 = vsel %vm447, %v443, 0.0
    %v452 = vmax.f32 %v430, %v448
    %v453 = vmax.f32 %v431, %v449
    %v454 = vmax.f32 %v432, %v450
    %v455 = vmax.f32 %v433, %v451
    %vm456 = vcmp.ge.s32.totalorder %v24, 1
    %vm457 = vcmp.ge.s32.totalorder %v25, 1
    %v458 = vrot.slane %v430, 7
    %v459 = vrot.slane %v432, 7
    %v460 = vrot.slane %v431, 7
    %v461 = vrot.slane %v433, 7
    %v462 = vsel %vm95, %v458, %v460
    %v463 = vsel %vm95, %v459, %v461
    %v464 = vsel %vm95, %v460, %v458
    %v465 = vsel %vm95, %v461, %v459
    %v466 = vsel %vm456, 1, 0
    %v467 = vsel %vm457, 1, 0
    %vm468 = vcmp.eq.s32.totalorder %v466, 1
    %vm469 = vcmp.eq.s32.totalorder %v467, 1
    %v470 = vsel %vm468, %v464, 0.0
    %v471 = vsel %vm469, %v462, 0.0
    %v472 = vsel %vm468, %v465, 0.0
    %v473 = vsel %vm469, %v463, 0.0
    %v474 = vmax.f32 %v452, %v470
    %v475 = vmax.f32 %v453, %v471
    %v476 = vmax.f32 %v454, %v472
    %v477 = vmax.f32 %v455, %v473
    %vm478 = vcmp.lt.s32.totalorder %v27, 127
    %479 = vrot.lane.b32.xlu0 %v474, 127
    %v480 = vpop.permute.xlu0 %479
    %481 = vrot.lane.b32.xlu0 %v475, 127
    %v482 = vpop.permute.xlu0 %481
    %483 = vrot.lane.b32.xlu0 %v476, 127
    %v484 = vpop.permute.xlu0 %483
    %485 = vrot.lane.b32.xlu0 %v477, 127
    %v486 = vpop.permute.xlu0 %485
    %v487 = vsel %vm478, 1, 0
    %vm488 = vcmp.eq.s32.totalorder %v487, 1
    %v489 = vsel %vm488, %v480, 0.0
    %v490 = vsel %vm488, %v482, 0.0
    %v491 = vsel %vm488, %v484, 0.0
    %v492 = vsel %vm488, %v486, 0.0
    %v493 = vmax.f32 %v474, %v489
    %v494 = vmax.f32 %v475, %v490
    %v495 = vmax.f32 %v476, %v491
    %v496 = vmax.f32 %v477, %v492
    %vm497 = vcmp.ge.s32.totalorder %v27, 1
    %498 = vrot.lane.b32.xlu0 %v474, 1
    %v499 = vpop.permute.xlu0 %498
    %500 = vrot.lane.b32.xlu0 %v475, 1
    %v501 = vpop.permute.xlu0 %500
    %502 = vrot.lane.b32.xlu0 %v476, 1
    %v503 = vpop.permute.xlu0 %502
    %504 = vrot.lane.b32.xlu0 %v477, 1
    %v505 = vpop.permute.xlu0 %504
    %v506 = vsel %vm497, 1, 0
    %vm507 = vcmp.eq.s32.totalorder %v506, 1
    %v508 = vsel %vm507, %v499, 0.0
    %v509 = vsel %vm507, %v501, 0.0
    %v510 = vsel %vm507, %v503, 0.0
    %v511 = vsel %vm507, %v505, 0.0
    %v512 = vmax.f32 %v493, %v508
    %v513 = vmax.f32 %v494, %v509
    %v514 = vmax.f32 %v495, %v510
    %v515 = vmax.f32 %v496, %v511
    %516 = vst [vmem:[#allocation5] sm:$0xff] %v512
    %517 = vst [vmem:[#allocation5 + $0x8] sm:$0xff] %v513
    %518 = vst [vmem:[#allocation5 + $0x10] sm:$0xff] %v514
    %519 = vst [vmem:[#allocation5 + $0x18] sm:$0xff] %v515
    // Predicated region
    $region10: #{tpu_custom_call.1} parent=1 // pred_check
      _
    $region11: #{tpu_custom_call.1} parent=1 // pred_check_branch
      %521 = sbr.rel (0) target = $region13
    $region12: #{tpu_custom_call.1} parent=1 // pred_region
      %s523 = ssub.s32 512, 512
      %524 = vsyncadd [#allocation4], %s523
      %s525 = sshll.u32 [#allocation5], 4
      %s526 = int_to_ptr.vmem [resolvable:$true] %s525
      %531 = dma.vmem_to_hbm [thread:$0]  %s526, 512, %s1, [#allocation4], 128, 128, 8
    $region13: #{tpu_custom_call.1} parent=1 // pred_fallthru
      _
    // Predicated region
    $region14: #{tpu_custom_call.1} parent=1 // pred_check
      _
    $region15: #{tpu_custom_call.1} parent=1 // pred_check_branch
      %533 = sbr.rel (0) target = $region17
    $region16: #{tpu_custom_call.1} parent=1 // pred_region
      %534 = dma.done [#allocation4], 512
    $region17: #{tpu_custom_call.1} parent=1 // pred_fallthru
      _
    %535 = vsyncpa [#allocation3], 1
    %536 = vsyncpa [#allocation4], 1

</llo_original>
